<compile_context>
chip_gen: v6e
topology: v6e:2x2x1
jax: 0.10.0
libtpu: 0.0.40
codegen_flags: <defaults>
</compile_context>

<pallas_src>
import jax
import jax.numpy as jnp
import numpy as np
from jax import lax
from jax.experimental import pallas as pl
from jax.experimental.pallas import tpu as pltpu

EPS = 1e-5


# ----------------------------- Pallas kernels ------------------------------ #

def _stats_kernel(x_ref, w_ref, s_ref):
    # x_ref: (tile_p, KP) bf16   w_ref: (KP, CP) bf16   s_ref: (1, 2, CP) f32
    y = jnp.dot(x_ref[...], w_ref[...], preferred_element_type=jnp.float32)
    s1 = jnp.sum(y, axis=0, keepdims=True)        # (1, CP)
    s2 = jnp.sum(y * y, axis=0, keepdims=True)    # (1, CP)
    s_ref[...] = jnp.concatenate([s1, s2], axis=0)[None, :, :]


def _norm_kernel(x_ref, w_ref, shift_ref, o_ref):
    # Conv-as-matmul (BN scale pre-folded into w_ref) + shift + ReLU per row tile.
    y = jnp.dot(x_ref[...], w_ref[...], preferred_element_type=jnp.float32)
    o_ref[...] = jnp.maximum(y + shift_ref[...], 0.0)


# ------------------------------- wrapper ----------------------------------- #

def _build_big_weight(weight, Cin, Cout):
    """weight: (Cin, Cout, 3, 3) torch ConvTranspose2d layout -> (4*Cin, 4*Cout).

    Row blocks (shift s): 0 = no shift, 1 = w-shift, 2 = h-shift, 3 = both.
    Column blocks (parity p): 0 = ee, 1 = eo, 2 = oe, 3 = oo.
    """
    Wt = jnp.transpose(weight, (2, 3, 0, 1)).astype(jnp.float32)   # (3,3,Cin,Cout)
    Wb = jnp.zeros((4 * Cin, 4 * Cout), jnp.float32)

    def kidx(d, s):                       # kernel tap contributed by parity d / shift s
        if d == 0:
            return 1 if s == 0 else None  # even output row/col: only center tap
        return 2 if s == 0 else 0         # odd output row/col: tap 2 (no shift) or 0 (shift)

    parities = [(0, 0), (0, 1), (1, 0), (1, 1)]   # (dh, dw) -> ee, eo, oe, oo
    for s in range(4):
        sh, sw = s // 2, s % 2
        for p, (dh, dw) in enumerate(parities):
            kh, kw = kidx(dh, sh), kidx(dw, sw)
            if kh is None or kw is None:
                continue
            Wb = Wb.at[s * Cin:(s + 1) * Cin, p * Cout:(p + 1) * Cout].set(Wt[kh, kw])
    return Wb


def basic2d_trans(x_nchw, weight, gamma, beta, tile_rows=1024):
    N, Cin, H, W = x_nchw.shape
    Cout = weight.shape[1]
    K = 4 * Cin
    C4 = 4 * Cout
    M = N * H * W

    # Row-packing factor: pack pf consecutive pixels per row when 4*Cout < 128 lanes.
    pf = 128 // C4 if (C4 < 128 and 128 % C4 == 0) else 1
    KP, CP = pf * K, pf * C4

    # Tile size (in pixels): multiple of 16*pf, large by default, capped so the grid
    # keeps >= 8 steps (megacore balance / pipeline depth on small problems).
    unit = 16 * pf
    req = max(unit, (int(tile_rows) // unit) * unit)
    balanced = ((pl.cdiv(M, 8) + unit - 1) // unit) * unit
    tile_rows = min(req, max(unit, balanced))
    T = pl.cdiv(M, tile_rows)
    Mp = T * tile_rows
    tile_p = tile_rows // pf

    # NHWC bf16 + 4-way shifted stack of the INPUT (shifts commute with channel matmul).
    # TODO(synk): build the shifted stack in-kernel from a haloed NHWC block to cut input
    # HBM traffic ~4x; kept as an XLA pre-pass here (bf16 already halves it).
    x = jnp.transpose(x_nchw, (0, 2, 3, 1)).astype(jnp.bfloat16)       # (N,H,W,Cin)
    zw = jnp.zeros((N, H, 1, Cin), jnp.bfloat16)
    zh = jnp.zeros((N, 1, W, Cin), jnp.bfloat16)
    x01 = jnp.concatenate([x[:, :, 1:, :], zw], axis=2)                # x[i, j+1]
    x10 = jnp.concatenate([x[:, 1:, :, :], zh], axis=1)                # x[i+1, j]
    x11 = jnp.concatenate([x10[:, :, 1:, :], zw], axis=2)              # x[i+1, j+1]
    xs = jnp.concatenate([x, x01, x10, x11], axis=-1).reshape(M, K)
    if Mp != M:
        xs = jnp.pad(xs, ((0, Mp - M), (0, 0)))    # zero rows: contribute 0 to s1/s2
    xs = xs.reshape(Mp // pf, KP)                  # row-major repack (layout no-op)

    # Packed weight: block-diagonal kron(I_pf, Wbig) maps packed rows -> packed rows.
    wb = _build_big_weight(weight, Cin, Cout)                          # (K, C4) f32
    wdiag = jnp.kron(jnp.eye(pf, dtype=jnp.float32), wb)               # (KP, CP) f32
    w1 = wdiag.astype(jnp.bfloat16)

    cparams = pltpu.CompilerParams(dimension_semantics=("parallel",),
                                   vmem_limit_bytes=64 * 1024 * 1024)
    w_spec = pl.BlockSpec((KP, CP), lambda t: (0, 0), pipeline_mode=pl.Buffered(1))

    # Pass 1: per-tile partial BN sums (tiny (T,2,CP) output, reduced in JAX).
    stats = pl.pallas_call(
        _stats_kernel,
        out_shape=jax.ShapeDtypeStruct((T, 2, CP), jnp.float32),
        grid=(T,),
        in_specs=[pl.BlockSpec((tile_p, KP), lambda t: (t, 0)), w_spec],
        out_specs=pl.BlockSpec((1, 2, CP), lambda t: (t, 0, 0)),
        compiler_params=cparams,
    )(xs, w1)

    s = jnp.sum(stats, axis=0)                            # (2, CP)
    s1 = jnp.sum(s[0].reshape(4 * pf, Cout), axis=0)      # fold parity/pack groups -> (Cout,)
    s2 = jnp.sum(s[1].reshape(4 * pf, Cout), axis=0)
    cnt = jnp.float32(4 * M)                              # N * 2H * 2W output pixels
    mean = s1 / cnt
    var = jnp.maximum(s2 / cnt - mean * mean, 0.0)        # biased var (torch BN train), clamped

    g = gamma.astype(jnp.float32)
    b = beta.astype(jnp.float32)
    scale_c = g * lax.rsqrt(var + EPS)                    # (Cout,)
    shift_c = b - mean * scale_c
    scale_p = jnp.tile(scale_c, 4 * pf)                   # broadcast to packed column layout
    shift_p = jnp.tile(shift_c, 4 * pf).reshape(1, CP)

    # Pass 2: BN scale folded into the f32 weight before the bf16 cast; shift+ReLU epilogue.
    # TODO(synk): for compute-bound (large-channel) configs, emit Y from pass 1 instead of
    # recomputing the matmul here.
    w2 = (wdiag * scale_p[None, :]).astype(jnp.bfloat16)

    yp = pl.pallas_call(
        _norm_kernel,
        out_shape=jax.ShapeDtypeStruct((Mp // pf, CP), jnp.float32),
        grid=(T,),
        in_specs=[pl.BlockSpec((tile_p, KP), lambda t: (t, 0)),
                  w_spec,
                  pl.BlockSpec((1, CP), lambda t: (0, 0))],
        out_specs=pl.BlockSpec((tile_p, CP), lambda t: (t, 0)),
        compiler_params=cparams,
    )(xs, w2, shift_p)

    # Packed [pixel-block | ee|eo|oe|oo] -> (N, Cout, 2H, 2W): one transpose of layout glue.
    y = yp.reshape(Mp, C4)[:M].reshape(N, H, W, 2, 2, Cout)
    y = jnp.transpose(y, (0, 5, 1, 3, 2, 4)).reshape(N, Cout, 2 * H, 2 * W)
    return y


# ------------------------------ reference ---------------------------------- #

def reference(x, weight, gamma, beta):
    """Plain-JAX f32 reference of the torch forward (training-mode BN)."""
    w_conv = jnp.transpose(weight, (1, 0, 2, 3))[:, :, ::-1, ::-1]   # (Cout, Cin, 3, 3), flipped
    y = lax.conv_general_dilated(
        x, w_conv, window_strides=(1, 1),
        padding=[(1, 2), (1, 2)], lhs_dilation=(2, 2),
        dimension_numbers=("NCHW", "OIHW", "NCHW"))
    mean = jnp.mean(y, axis=(0, 2, 3), keepdims=True)
    var = jnp.mean((y - mean) ** 2, axis=(0, 2, 3), keepdims=True)
    yhat = (y - mean) * lax.rsqrt(var + EPS)
    out = yhat * gamma.reshape(1, -1, 1, 1) + beta.reshape(1, -1, 1, 1)
    return jnp.maximum(out, 0.0)


if __name__ == "__main__":
    N, Cin, Cout, H, W = 2, 4, 8, 16, 16
    key = jax.random.PRNGKey(0)
    k1, k2, k3, k4 = jax.random.split(key, 4)

    x = jax.random.normal(k1, (N, Cin, H, W), dtype=jnp.float32)
    weight = jax.random.normal(k2, (Cin, Cout, 3, 3), dtype=jnp.float32) / jnp.sqrt(Cin * 9.0)
    gamma = 1.0 + 0.1 * jax.random.normal(k3, (Cout,), dtype=jnp.float32)
    beta = 0.1 * jax.random.normal(k4, (Cout,), dtype=jnp.float32)

    out = jax.block_until_ready(basic2d_trans(x, weight, gamma, beta))
    assert out.shape == (N, Cout, 2 * H, 2 * W)

    ref = reference(x, weight, gamma, beta)
    # bf16 MXU inputs (f32 accumulation) vs an all-f32 reference -> looser tolerance
    # (expected drift per the review, not a bug).
    np.testing.assert_allclose(np.asarray(out), np.asarray(ref), rtol=2e-2, atol=5e-2)
    print("KERNEL_OK")
</pallas_src>

<mosaic_0001>
module attributes {stable_mosaic.version = 11 : i64} {
  func.func @_stats_kernel(%arg0: i32, %arg1: memref<16x64xbf16, #tpu.memory_space<vmem>>, %arg2: memref<64x128xbf16, #tpu.memory_space<vmem>>, %arg3: memref<1x2x128xf32, #tpu.memory_space<vmem>>) attributes {dimension_semantics = [#tpu.dimension_semantics<parallel>], iteration_bounds = array<i64: 8>, scalar_prefetch = 0 : i64, scratch_operands = 0 : i64, tpu.core_type = #tpu.core_type<tc>, window_params = [{transform_indices = @transform_0, window_bounds = array<i64: 16, 64>}, {pipeline_mode = #tpu.pipeline_mode<synchronous>, transform_indices = @transform_1, window_bounds = array<i64: 64, 128>}, {transform_indices = @transform_2, window_bounds = array<i64: 1, 2, 128>}]} {
    %c0 = arith.constant 0 : index
    %c0_0 = arith.constant 0 : index
    %0 = vector.load %arg1[%c0, %c0_0] : memref<16x64xbf16, #tpu.memory_space<vmem>>, vector<16x64xbf16>
    %c0_1 = arith.constant 0 : index
    %c0_2 = arith.constant 0 : index
    %1 = vector.load %arg2[%c0_1, %c0_2] : memref<64x128xbf16, #tpu.memory_space<vmem>>, vector<64x128xbf16>
    %cst = arith.constant dense<0.000000e+00> : vector<16x128xf32>
    %2 = tpu.matmul %0, %1, %cst {dimension_numbers = #tpu.dot_dimension_numbers<[1], [0], [0], [1], [0, 0, 1, 1], [], []>} : vector<16x64xbf16>, vector<64x128xbf16>, vector<16x128xf32> -> vector<16x128xf32>
    %cst_3 = arith.constant dense<0.000000e+00> : vector<128xf32>
    %3 = vector.multi_reduction <add>, %2, %cst_3 [0] : vector<16x128xf32> to vector<128xf32>
    %4 = vector.shape_cast %3 : vector<128xf32> to vector<1x128xf32>
    %5 = arith.mulf %2, %2 : vector<16x128xf32>
    %cst_4 = arith.constant dense<0.000000e+00> : vector<128xf32>
    %6 = vector.multi_reduction <add>, %5, %cst_4 [0] : vector<16x128xf32> to vector<128xf32>
    %7 = vector.shape_cast %6 : vector<128xf32> to vector<1x128xf32>
    %8 = tpu.concatenate %4, %7 in 0 : vector<1x128xf32>, vector<1x128xf32> -> vector<2x128xf32>
    %9 = vector.shape_cast %8 : vector<2x128xf32> to vector<1x2x128xf32>
    %c0_5 = arith.constant 0 : index
    %c0_6 = arith.constant 0 : index
    %c0_7 = arith.constant 0 : index
    %10 = vector.load %arg3[%c0_5, %c0_6, %c0_7] : memref<1x2x128xf32, #tpu.memory_space<vmem>>, vector<1x2x128xf32>
    tpu.vector_store %arg3[%c0_5, %c0_6, %c0_7], %9 {strides = array<i32>} : memref<1x2x128xf32, #tpu.memory_space<vmem>>, vector<1x2x128xf32>,
    return
  }
  func.func @transform_0(%arg0: i32) -> (i32, i32) {
    %c0_i32 = arith.constant 0 : i32
    %c0_i32_0 = arith.constant 0 : i32
    return %arg0, %c0_i32 : i32, i32
  }
  func.func @transform_1(%arg0: i32) -> (i32, i32) {
    %c0_i32 = arith.constant 0 : i32
    %c0_i32_0 = arith.constant 0 : i32
    %c0_i32_1 = arith.constant 0 : i32
    return %c0_i32, %c0_i32_0 : i32, i32
  }
  func.func @transform_2(%arg0: i32) -> (i32, i32, i32) {
    %c0_i32 = arith.constant 0 : i32
    %c0_i32_0 = arith.constant 0 : i32
    %c0_i32_1 = arith.constant 0 : i32
    return %arg0, %c0_i32, %c0_i32_0 : i32, i32, i32
  }
}

</mosaic_0001>

<llo_original>
// kernel: tpu_custom_call.1
$region0: #{tpu_custom_call.1}
  #allocation0 [shape = 'u32[]', space=smem, size = 0x4, offset = 0x4, fixed_abs, tag = 'smem constant byte address 0x4 - core index']
  #allocation1 [shape = 'u32[144,128]{1,0:T(1,128)}', space=vmem, size = 0x12000, scoped, tag = 'internal scratch']
  %s0 = inlined_call_operand.vmem [shape: bf16[128,64], index: 0, kind: input, shape index: {}]
  %s1 = inlined_call_operand.vmem [shape: bf16[64,128], index: 1, kind: input, shape index: {}]
  %s2 = inlined_call_operand.hbm [shape: f32[8,2,128], index: 2, kind: output, shape index: {}]
  %s3 = sld [smem:[#allocation0]]
  $region41: #{tpu_custom_call.1} parent=0
    _
  %s5 = ssub.s32 1, %s3
  %s6 = scalar_select 0, %s5, %s3
  $region1: #{tpu_custom_call.1} parent=0
    #allocation2 [shape = 'u8[2048]{0}', space=vmem, size = 0x800, scoped, tag = 'output window, operand 0']
    #allocation3 [shape = 's32[2]{0}', space=sflag, size = 0x8, scoped, tag = 'scoped memory for tpu_custom_call.1']
    %7 = vsyncpa [#allocation3], 0
    %s8 = scalar_lea.sflag [#allocation3], 1
    %9 = vsyncpa %s8, 0
    loop: start=0, step=1, limit=10
    $region2: #{tpu_custom_call.1} parent=1 // loop_pre_header
      _
    $region3: #{tpu_custom_call.1} parent=1 // loop_header
      %s11 = sphi 0, %s15
      %p12 = scmp.ge.s32.totalorder %s11, 10
      %s21 = sphi 0, %s23
      %s24 = sphi 0, %s21
      %s25 = sphi 0, %s24
      %s41 = sphi 0, %s25
      %s45 = sphi 0, %s45
      %s47 = sphi 0, %s45
      %s48 = sphi 0, %s47
      %s62 = sphi 0, %s48
      %s68 = sphi 0, %s70
      %s71 = sphi 0, %s68
      %s72 = sphi 0, %s71
      %s88 = sphi 0, %s72
    $region4: #{tpu_custom_call.1} parent=1 // loop_header_branch
      %14 = sbr.rel (%p12) target = $region8
    $region5: #{tpu_custom_call.1} parent=1 // loop_body
      %s16 = ssub.s32 %s11, 1
      %s17 = ssub.s32 %s11, 2
      %s18 = sadd.s32 %s11, 1
      %s19 = ssub.s32 %s11, %s18
      %p20 = scmp.eq.s32.totalorder %s19, 0
      %s22 = sadd.s32 %s21, 1
      %s23 = scalar_select %p20, %s21, %s22
      %p26 = pneg %p20
      %p27 = scmp.eq.s32.totalorder %s11, 7
      %p28 = por %p26, %p27
      %p29 = scmp.ne.s32.totalorder %s21, %s24
      %p30 = scmp.eq.s32.totalorder %s11, 0
      %p31 = por %p29, %p30
      %p32 = scmp.ne.s32.totalorder %s21, %s24
      %p33 = scmp.eq.s32.totalorder %s16, 7
      %p34 = por %p32, %p33
      %p35 = scmp.ne.s32.totalorder %s24, %s25
      %p36 = scmp.eq.s32.totalorder %s16, 0
      %p37 = por %p35, %p36
      %p38 = scmp.ne.s32.totalorder %s24, %s25
      %p39 = scmp.eq.s32.totalorder %s17, 7
      %p40 = por %p38, %p39
      %p42 = scmp.ne.s32.totalorder %s25, %s41
      %p43 = scmp.eq.s32.totalorder %s17, 0
      %p44 = por %p42, %p43
      %s46 = sadd.s32 %s45, 1
      %p49 = scmp.eq.s32.totalorder %s11, 7
      %p50 = scmp.ne.s32.totalorder %s45, %s47
      %p51 = scmp.eq.s32.totalorder %s11, 0
      %p52 = por %p50, %p51
      %p53 = scmp.ne.s32.totalorder %s45, %s47
      %p54 = scmp.eq.s32.totalorder %s16, 7
      %p55 = por %p53, %p54
      %p56 = scmp.ne.s32.totalorder %s47, %s48
      %p57 = scmp.eq.s32.totalorder %s16, 0
      %p58 = por %p56, %p57
      %p59 = scmp.ne.s32.totalorder %s47, %s48
      %p60 = scmp.eq.s32.totalorder %s17, 7
      %p61 = por %p59, %p60
      %p63 = scmp.ne.s32.totalorder %s48, %s62
      %p64 = scmp.eq.s32.totalorder %s17, 0
      %p65 = por %p63, %p64
      %s66 = ssub.s32 %s11, %s18
      %p67 = scmp.eq.s32.totalorder %s66, 0
      %s69 = sadd.s32 %s68, 1
      %s70 = scalar_select %p67, %s68, %s69
      %p73 = pneg %p67
      %p74 = scmp.eq.s32.totalorder %s11, 7
      %p75 = por %p73, %p74
      %p76 = scmp.ne.s32.totalorder %s68, %s71
      %p77 = scmp.eq.s32.totalorder %s11, 0
      %p78 = por %p76, %p77
      %p79 = scmp.ne.s32.totalorder %s68, %s71
      %p80 = scmp.eq.s32.totalorder %s16, 7
      %p81 = por %p79, %p80
      %p82 = scmp.ne.s32.totalorder %s71, %s72
      %p83 = scmp.eq.s32.totalorder %s16, 0
      %p84 = por %p82, %p83
      %p85 = scmp.ne.s32.totalorder %s71, %s72
      %p86 = scmp.eq.s32.totalorder %s17, 7
      %p87 = por %p85, %p86
      %p89 = scmp.ne.s32.totalorder %s72, %s88
      %p90 = scmp.eq.s32.totalorder %s17, 0
      %p91 = por %p89, %p90
      %p92 = scmp.le.s32.totalorder 1, %s11
      %p93 = scmp.lt.s32.totalorder %s11, 9
      %p94 = pnand %p92, %p93
      %p95 = pneg %p94
      // Predicated region
      $region9: #{tpu_custom_call.1} parent=5 // pred_check
        _
      $region10: #{tpu_custom_call.1} parent=5 // pred_check_branch
        %97 = sbr.rel (%p94) target = $region12
      $region11: #{tpu_custom_call.1} parent=5 // pred_region
        %s98 = ssub.s32 %s11, 1
        // Predicated region
        $region13: #{tpu_custom_call.1} parent=11 // pred_check
          %p99 = pneg %p58
        $region14: #{tpu_custom_call.1} parent=11 // pred_check_branch
          %101 = sbr.rel (%p99) target = $region16
        $region15: #{tpu_custom_call.1} parent=11 // pred_region
          _
        $region16: #{tpu_custom_call.1} parent=11 // pred_fallthru
          _
      $region12: #{tpu_custom_call.1} parent=5 // pred_fallthru
        _
      %p102 = scmp.lt.s32.totalorder %s11, 8
      // Predicated region
      $region17: #{tpu_custom_call.1} parent=5 // pred_check
        %p103 = pneg %p102
      $region18: #{tpu_custom_call.1} parent=5 // pred_check_branch
        %105 = sbr.rel (%p103) target = $region20
      $region19: #{tpu_custom_call.1} parent=5 // pred_region
        // Predicated region
        $region21: #{tpu_custom_call.1} parent=19 // pred_check
          %p106 = pneg %p31
        $region22: #{tpu_custom_call.1} parent=19 // pred_check_branch
          %108 = sbr.rel (%p106) target = $region24
        $region23: #{tpu_custom_call.1} parent=19 // pred_region
          %s109 = smul.u32 2, %s11
          %p110 = scmp.lt.s32.totalorder %s109, 15
          %s111 = scalar_select %p110, %s109, 15
          %s112 = smul.addr %s111, 4
          %s113 = scalar_lea.vmem %s0, %s112
          %s114 = smul.u32 2, %s11
        $region24: #{tpu_custom_call.1} parent=19 // pred_fallthru
          _
      $region20: #{tpu_custom_call.1} parent=5 // pred_fallthru
        _
      %p115 = scmp.le.s32.totalorder 1, %s11
      %p116 = scmp.lt.s32.totalorder %s11, 9
      %p117 = pnand %p115, %p116
      %p118 = pneg %p117
      // Predicated region
      $region25: #{tpu_custom_call.1} parent=5 // pred_check
        _
      $region26: #{tpu_custom_call.1} parent=5 // pred_check_branch
        %120 = sbr.rel (%p117) target = $region28
      $region27: #{tpu_custom_call.1} parent=5 // pred_region
        %s121 = ssub.s32 %s11, 1
        %s122 = smul.u32 2, %s16
        %p123 = scmp.lt.s32.totalorder %s122, 15
        %s124 = scalar_select %p123, %s122, 15
        %s125 = smul.addr %s124, 4
        %s126 = scalar_lea.vmem %s0, %s125
        %p127 = pneg %p37
        %p128 = pneg %p34
        %p129 = pneg %p58
        %p130 = pneg %p55
        %p131 = pneg %p84
        %p132 = pneg %p81
        %s133 = sand.u32 %s71, 1
        %s134 = scalar_lea.sflag [#allocation3], %s133
        %s135 = sand.u32 %s71, 1
        %s136 = smul.addr %s135, 2
        %s137 = scalar_lea.vmem [#allocation2], %s136
        %s138 = smul.u32 2, %s16
        %p139 = scmp.lt.s32.totalorder %s138, 15
        %s140 = scalar_select %p139, %s138, 15
        %s141 = smul.addr %s140, 4
        %s142 = scalar_lea.vmem %s0, %s141
        %s143 = smul.u32 2, %s16
        %v145 = vld [vmem:[%s142] sm:$0xf]
        %v146 = vld [vmem:[%s142 + $0x4] sm:$0xf]
        %v147 = vld [vmem:[%s1] sm:$0xf]
        %v148 = vld [vmem:[%s1 + $0x4] sm:$0xf]
        %v149 = vld [vmem:[%s1 + $0x8] sm:$0xf]
        %v150 = vld [vmem:[%s1 + $0xc] sm:$0xf]
        %v151 = vld [vmem:[%s1 + $0x10] sm:$0xf]
        %v152 = vld [vmem:[%s1 + $0x14] sm:$0xf]
        %v153 = vld [vmem:[%s1 + $0x18] sm:$0xf]
        %v154 = vld [vmem:[%s1 + $0x1c] sm:$0xf]
        %v157 = vunpack.c.l.b16 %v145
        %v158 = vunpack.c.l.b16 %v146
        %v159 = vpack.c.b16 %v158, %v157
        %v168 = vunpack.c.l.b16 %v147
        %v169 = vunpack.c.l.b16 %v148
        %v170 = vunpack.c.l.b16 %v149
        %v171 = vunpack.c.l.b16 %v150
        %v172 = vunpack.c.l.b16 %v151
        %v173 = vunpack.c.l.b16 %v152
        %v174 = vunpack.c.l.b16 %v153
        %v175 = vunpack.c.l.b16 %v154
        %v176 = vpack.c.b16 %v169, %v168
        %v177 = vpack.c.b16 %v171, %v170
        %v178 = vpack.c.b16 %v173, %v172
        %v179 = vpack.c.b16 %v175, %v174
        %vm184 = vcmask 523264
        %v186 = vsel %vm184, %v159, 0
        %188 = vmatprep.subr.bf16.mxu0 0
        %189 = vmatpush1.bf16.msra.mxu0 0
        %190 = vmatprep.subr.bf16.mxu0 0
        %191 = vmatpush1.bf16.msra.mxu0 0
        %192 = vmatprep.subr.bf16.mxu0 0
        %193 = vmatpush1.bf16.msra.mxu0 0
        %194 = vmatprep.subr.bf16.mxu0 0
        %195 = vmatpush1.bf16.msra.mxu0 0
        %196 = vmatprep.subr.bf16.mxu0 0
        %197 = vmatpush1.bf16.msra.mxu0 %v179
        %198 = vmatprep.subr.bf16.mxu0 0
        %199 = vmatpush1.bf16.msra.mxu0 %v178
        %200 = vmatprep.subr.bf16.mxu0 0
        %201 = vmatpush1.bf16.msra.mxu0 %v177
        %202 = vmatprep.subr.bf16.mxu0 0
        %203 = vmatpush1.bf16.msra.mxu0 %v176
        %204 = vmatprep.subr.bf16.mxu0 0
        %205 = vmatpush2.bf16.msra.mxu0 0
        %206 = vmatprep.subr.bf16.mxu0 0
        %207 = vmatpush2.bf16.msra.mxu0 0
        %208 = vmatprep.subr.bf16.mxu0 0
        %209 = vmatpush2.bf16.msra.mxu0 0
        %210 = vmatprep.subr.bf16.mxu0 0
        %211 = vmatpush2.bf16.msra.mxu0 0
        %212 = vmatprep.subr.bf16.mxu0 0
        %213 = vmatpush2.bf16.msra.mxu0 0
        %214 = vmatprep.subr.bf16.mxu0 0
        %215 = vmatpush2.bf16.msra.mxu0 0
        %216 = vmatprep.subr.bf16.mxu0 0
        %217 = vmatpush2.bf16.msra.mxu0 0
        %218 = vmatprep.subr.bf16.mxu0 0
        %219 = vmatpush2.bf16.msra.mxu0 0
        %220 = vmatprep.mubr.bf16.mxu0 0
        %221 = vmatmul.mubr.bf16.gmra.mxu0 %v186
        %v222 = vpop.f32.mrf.mxu0
        %v223 = vadd.f32 0.0, %v222
        %v224 = vpop.f32.mrf.mxu0
        %v225 = vpop.f32.mrf.mxu0
        %v226 = vadd.f32 0.0, %v225
        %v227 = vpop.f32.mrf.mxu0
        %228 = vdwg.mxu0
        %v229 = vadd.f32 %v223, %v226
        %v230 = vrot.slane %v229, 4
        %v231 = vadd.f32 %v229, %v230
        %v232 = vrot.slane %v231, 2
        %v233 = vadd.f32 %v231, %v232
        %v234 = vrot.slane %v233, 1
        %v235 = vadd.f32 %v233, %v234
        %v236 = vmul.f32 %v223, %v223
        %v237 = vmul.f32 %v226, %v226
        %v238 = vadd.f32 %v236, %v237
        %v239 = vrot.slane %v238, 4
        %v240 = vadd.f32 %v238, %v239
        %v241 = vrot.slane %v240, 2
        %v242 = vadd.f32 %v240, %v241
        %v243 = vrot.slane %v242, 1
        %v244 = vadd.f32 %v242, %v243
        %vm245 = vcmask 1040384
        %v246 = vsel %vm245, %v235, %v244
        %247 = vst [vmem:[%s137] sm:$0x3] %v246
        %s248 = sand.u32 %s71, 1
        %s249 = scalar_lea.sflag [#allocation3], %s248
        %s250 = sand.u32 %s71, 1
        %s251 = smul.addr %s250, 2
        %s252 = scalar_lea.vmem [#allocation2], %s251
        // Predicated region
        $region29: #{tpu_custom_call.1} parent=27 // pred_check
          %p253 = pneg %p81
        $region30: #{tpu_custom_call.1} parent=27 // pred_check_branch
          %255 = sbr.rel (%p253) target = $region32
        $region31: #{tpu_custom_call.1} parent=27 // pred_region
          %s257 = ssub.s32 32, 32
          %258 = vsyncadd %s249, %s257
          %s259 = smul.addr %s16, 32
          %s260 = scalar_lea.hbm %s2, %s259
          %s262 = sshll.u32 %s252, 4
          %s263 = int_to_ptr.vmem [resolvable:$true] %s262
          %265 = dma.vmem_to_hbm [thread:$0]  %s263, 32, %s260, %s249
        $region32: #{tpu_custom_call.1} parent=27 // pred_fallthru
          _
      $region28: #{tpu_custom_call.1} parent=5 // pred_fallthru
        _
      %p266 = scmp.le.s32.totalorder 2, %s11
      // Predicated region
      $region33: #{tpu_custom_call.1} parent=5 // pred_check
        %p267 = pneg %p266
      $region34: #{tpu_custom_call.1} parent=5 // pred_check_branch
        %269 = sbr.rel (%p267) target = $region36
      $region35: #{tpu_custom_call.1} parent=5 // pred_region
        %s270 = ssub.s32 %s11, 2
        // Predicated region
        $region37: #{tpu_custom_call.1} parent=35 // pred_check
          %p271 = pneg %p87
        $region38: #{tpu_custom_call.1} parent=35 // pred_check_branch
          %273 = sbr.rel (%p271) target = $region40
        $region39: #{tpu_custom_call.1} parent=35 // pred_region
          %s274 = sand.u32 %s72, 1
          %s275 = scalar_lea.sflag [#allocation3], %s274
          %s276 = sand.u32 %s72, 1
          %s277 = smul.addr %s276, 2
          %s278 = scalar_lea.vmem [#allocation2], %s277
          %279 = dma.done %s275, 32
        $region40: #{tpu_custom_call.1} parent=35 // pred_fallthru
          _
      $region36: #{tpu_custom_call.1} parent=5 // pred_fallthru
        _
    $region6: #{tpu_custom_call.1} parent=1 // loop_footer
      %s15 = sadd.s32 1, %s11
    $region7: #{tpu_custom_call.1} parent=1 // loop_footer_branch
      %10 = sbr.rel target = $region3
    $region8: #{tpu_custom_call.1} parent=1 // loop_exit
      _
    %280 = vsyncpa [#allocation3], 1
    %s281 = scalar_lea.sflag [#allocation3], 1
    %282 = vsyncpa %s281, 1

</llo_original>
